<compile_context>
chip_gen: v7x
topology: tpu7x:2x2x1
jax: 0.10.0
libtpu: 0.0.40
codegen_flags: <defaults>
</compile_context>

<pallas_src>
import functools

import jax
import jax.numpy as jnp
from jax.experimental import pallas as pl
from jax.experimental.pallas import tpu as pltpu

_MiB = 1024 * 1024


def _budgets():
    """Generation-aware VMEM budgets (bytes)."""
    try:
        vmem = int(pltpu.get_tpu_info().vmem_capacity_bytes)
    except Exception:
        vmem = 64 * _MiB  # conservative: assume v7x-sized VMEM
    if vmem >= 96 * _MiB:
        # v5e / v6e: 128 MiB physical VMEM -> larger tiles shave per-step
        # overhead on the lower-BW parts.
        return dict(fused_slab=12 * _MiB, p1_tile=12 * _MiB, p2_tile=8 * _MiB,
                    vmem_limit=64 * _MiB)
    # v7x: 64 MiB per TensorCore -> keep double-buffered footprints small.
    return dict(fused_slab=6 * _MiB, p1_tile=6 * _MiB, p2_tile=4 * _MiB,
                vmem_limit=32 * _MiB)


def _pick_tile(hw, c, itemsize, budget_bytes):
    """Largest lane-dense (multiple-of-128) spatial tile <= hw whose (C, T)
    slab fits `budget_bytes`; tiles need not divide hw (cdiv grid + mask).
    Falls back to the full extent only when hw < 128 (always layout-legal)."""
    if hw < 128:
        return hw
    t = min(2048, (hw // 128) * 128)
    while t > 128 and c * t * itemsize > budget_bytes:
        t -= 128
    return t


def _gate_from_pooled(pooled, w1t, b1, w2, b2, a, b):
    """pooled: (C, 1) mean -> gate: (C, 1).  Tiny FC1 -> SinLU -> FC2 -> sig."""
    # FC1 (1x1 conv C->R): (1, R) via sublane reduce of (C, R) * (C, 1).
    h = jnp.sum(w1t * pooled, axis=0, keepdims=True) + b1
    h = jax.nn.sigmoid(h) * (h + a * jnp.sin(b * h))          # SinLU, (1, R)
    # FC2 (1x1 conv R->C): (C, 1) via lane reduce of (C, R) * (1, R).
    s = jnp.sum(w2 * h, axis=1, keepdims=True) + b2
    return jax.nn.sigmoid(s)                                   # (C, 1)


# --------------------------- fused single-pass ---------------------------

def se_fused_kernel(x_ref, w1t_ref, b1_ref, w2_ref, b2_ref, a_ref, bp_ref,
                    o_ref, *, inv_hw):
    x = x_ref[0].astype(jnp.float32)                           # (C, HW)
    pooled = jnp.sum(x, axis=-1, keepdims=True) * inv_hw       # (C, 1)
    gate = _gate_from_pooled(pooled, w1t_ref[...], b1_ref[...],
                             w2_ref[...], b2_ref[...], a_ref[0], bp_ref[0])
    o_ref[0] = (x * gate).astype(o_ref.dtype)


# --------------------------- two-phase fallback ---------------------------

def se_scale_kernel(x_ref, w1t_ref, b1_ref, w2_ref, b2_ref, a_ref, bp_ref,
                    scale_ref, acc_ref, *, inv_hw, hw, tile, needs_mask):
    """Accumulate the spatial sum per channel across HW tiles; on the last
    tile run the tiny gate chain once per batch element."""
    t = pl.program_id(1)

    @pl.when(t == 0)
    def _init():
        acc_ref[...] = jnp.zeros_like(acc_ref)

    x = x_ref[0].astype(jnp.float32)                           # (C, T) f32
    if needs_mask:
        # cdiv grid: zero the padded lanes of the boundary tile before the
        # lane reduce (padding contents are unspecified).
        lane = jax.lax.broadcasted_iota(jnp.int32, x.shape, 1)
        x = jnp.where(lane < (hw - t * tile), x, 0.0)
    acc_ref[...] += jnp.sum(x, axis=-1, keepdims=True)         # (C, 1)

    @pl.when(t == pl.num_programs(1) - 1)
    def _finalize():
        pooled = acc_ref[...] * inv_hw                         # (C, 1) mean
        scale_ref[0] = _gate_from_pooled(pooled, w1t_ref[...], b1_ref[...],
                                         w2_ref[...], b2_ref[...],
                                         a_ref[0], bp_ref[0])


def scale_mul_kernel(x_ref, scale_ref, o_ref):
    # (1, C, T) * (1, C, 1): gate broadcasts over the lane (spatial) axis.
    o_ref[...] = (x_ref[...] * scale_ref[...]).astype(o_ref.dtype)


# ------------------------------- wrapper ----------------------------------

def squeeze_forward(x, w1, b1, w2, b2, a, b_param, *, force_two_phase=False):
    """x: (N, C, H, W).  Returns x * sigmoid(se(x)), same shape/dtype."""
    N, C, H, W = x.shape
    HW = H * W
    R = w1.shape[0]

    x2 = x.reshape(N, C, HW)
    w1t = jnp.transpose(w1)            # (C, R)  -> sublane-reduce form for FC1
    b1r = b1.reshape(1, R)             # lane-major bias row
    b2c = b2.reshape(C, 1)             # column bias (matches gate layout)

    itemsize = jnp.dtype(x.dtype).itemsize
    budgets = _budgets()
    slab_bytes = C * HW * itemsize

    # ---- Fused single-pass path: one read + one write of x ----------------
    if (not force_two_phase) and slab_bytes <= budgets["fused_slab"]:
        out = pl.pallas_call(
            functools.partial(se_fused_kernel, inv_hw=1.0 / HW),
            out_shape=jax.ShapeDtypeStruct((N, C, HW), x.dtype),
            grid=(N,),
            in_specs=[
                pl.BlockSpec((1, C, HW), lambda n: (n, 0, 0)),   # x slab
                pl.BlockSpec((C, R), lambda n: (0, 0)),          # w1^T
                pl.BlockSpec((1, R), lambda n: (0, 0)),          # b1 (row)
                pl.BlockSpec((C, R), lambda n: (0, 0)),          # w2
                pl.BlockSpec((C, 1), lambda n: (0, 0)),          # b2 (col)
                pl.BlockSpec(memory_space=pltpu.SMEM),           # a  (scalar)
                pl.BlockSpec(memory_space=pltpu.SMEM),           # b  (scalar)
            ],
            out_specs=pl.BlockSpec((1, C, HW), lambda n: (n, 0, 0)),
            compiler_params=pltpu.CompilerParams(
                dimension_semantics=("parallel",),
                vmem_limit_bytes=budgets["vmem_limit"]),
        )(x2, w1t, b1r, w2, b2c, a, b_param)
        return out.reshape(N, C, H, W)

    # ---- Two-phase fallback (large C * HW) ---------------------------------
    # Phase 1 streams only one input -> can use a larger tile than phase 2.
    T1 = _pick_tile(HW, C, itemsize, budgets["p1_tile"])
    T2 = _pick_tile(HW, C, itemsize, budgets["p2_tile"])
    n_t1 = -(-HW // T1)
    n_t2 = -(-HW // T2)

    cp_reduce = pltpu.CompilerParams(
        dimension_semantics=("parallel", "arbitrary"),
        vmem_limit_bytes=budgets["vmem_limit"])
    cp_mul = pltpu.CompilerParams(
        dimension_semantics=("parallel", "parallel"),
        vmem_limit_bytes=budgets["vmem_limit"])

    # Phase 1: tiny per-(n, c) SE gate, output (N, C, 1).
    # Note: for very large C*R, the constant weight blocks could be
    # single-buffered (pipeline_mode=pl.Buffered(1)); negligible here.
    scale = pl.pallas_call(
        functools.partial(se_scale_kernel, inv_hw=1.0 / HW, hw=HW, tile=T1,
                          needs_mask=(HW % T1 != 0)),
        out_shape=jax.ShapeDtypeStruct((N, C, 1), jnp.float32),
        grid=(N, n_t1),
        in_specs=[
            pl.BlockSpec((1, C, T1), lambda n, t: (n, 0, t)),    # x tile
            pl.BlockSpec((C, R), lambda n, t: (0, 0)),           # w1^T
            pl.BlockSpec((1, R), lambda n, t: (0, 0)),           # b1 (row)
            pl.BlockSpec((C, R), lambda n, t: (0, 0)),           # w2
            pl.BlockSpec((C, 1), lambda n, t: (0, 0)),           # b2 (col)
            pl.BlockSpec(memory_space=pltpu.SMEM),               # a
            pl.BlockSpec(memory_space=pltpu.SMEM),               # b
        ],
        out_specs=pl.BlockSpec((1, C, 1), lambda n, t: (n, 0, 0)),
        scratch_shapes=[pltpu.VMEM((C, 1), jnp.float32)],
        compiler_params=cp_reduce,
    )(x2, w1t, b1r, w2, b2c, a, b_param)

    # Phase 2: bulk mem-bound multiply out = x * gate.
    out = pl.pallas_call(
        scale_mul_kernel,
        out_shape=jax.ShapeDtypeStruct((N, C, HW), x.dtype),
        grid=(N, n_t2),
        in_specs=[
            pl.BlockSpec((1, C, T2), lambda n, t: (n, 0, t)),    # x tile
            pl.BlockSpec((1, C, 1), lambda n, t: (n, 0, 0)),     # gate
        ],
        out_specs=pl.BlockSpec((1, C, T2), lambda n, t: (n, 0, t)),
        compiler_params=cp_mul,
    )(x2, scale)

    return out.reshape(N, C, H, W)


def squeeze_reference(x, w1, b1, w2, b2, a, b_param):
    pooled = jnp.mean(x, axis=(2, 3))                            # (N, C)
    h = pooled @ w1.T + b1                                       # (N, R)
    h = jax.nn.sigmoid(h) * (h + a[0] * jnp.sin(b_param[0] * h))
    s = h @ w2.T + b2                                            # (N, C)
    scale = jax.nn.sigmoid(s)[:, :, None, None]
    return x * scale


if __name__ == "__main__":
    # Module config: Squeeze(in_ch=8, reduced_factor=2) -> reduced = 4
    N, C, H, W = 2, 8, 16, 16
    R = C // 2

    key = jax.random.PRNGKey(0)
    kx, k1, kb1, k2, kb2 = jax.random.split(key, 5)

    x = jax.random.normal(kx, (N, C, H, W), dtype=jnp.float32)

    # Deterministic synthetic params (Conv2d 1x1 weights squeezed to 2D).
    w1 = jax.random.normal(k1, (R, C), dtype=jnp.float32) * 0.3
    b1 = jax.random.normal(kb1, (R,), dtype=jnp.float32) * 0.1
    w2 = jax.random.normal(k2, (C, R), dtype=jnp.float32) * 0.3
    b2 = jax.random.normal(kb2, (C,), dtype=jnp.float32) * 0.1
    # SinLU params: initialized to ones, as in the PyTorch __init__.
    a = jnp.ones((1,), dtype=jnp.float32)
    b_param = jnp.ones((1,), dtype=jnp.float32)

    ref = squeeze_reference(x, w1, b1, w2, b2, a, b_param)

    # 1) Fused single-pass path (default at these shapes).
    out = jax.block_until_ready(squeeze_forward(x, w1, b1, w2, b2, a, b_param))
    assert out.shape == x.shape and out.dtype == x.dtype
    assert jnp.allclose(out, ref, atol=1e-5, rtol=1e-5), "fused path mismatch"

    # 2) Two-phase fallback, lane-aligned spatial extent (HW = 256).
    out2 = jax.block_until_ready(
        squeeze_forward(x, w1, b1, w2, b2, a, b_param, force_two_phase=True))
    assert jnp.allclose(out2, ref, atol=1e-5, rtol=1e-5), "two-phase mismatch"

    # 3) Two-phase fallback, ragged spatial extent (HW = 130, masked tail).
    Hr, Wr = 10, 13
    xr = jax.random.normal(jax.random.PRNGKey(1), (N, C, Hr, Wr),
                           dtype=jnp.float32)
    out3 = jax.block_until_ready(
        squeeze_forward(xr, w1, b1, w2, b2, a, b_param, force_two_phase=True))
    ref3 = squeeze_reference(xr, w1, b1, w2, b2, a, b_param)
    assert jnp.allclose(out3, ref3, atol=1e-5, rtol=1e-5), "ragged-tail mismatch"

    print("KERNEL_OK")
</pallas_src>

<mosaic_0001>
module attributes {stable_mosaic.version = 11 : i64} {
  func.func @se_fused_kernel(%arg0: i32, %arg1: memref<1x8x256xf32, #tpu.memory_space<vmem>>, %arg2: memref<8x4xf32, #tpu.memory_space<vmem>>, %arg3: memref<1x4xf32, #tpu.memory_space<vmem>>, %arg4: memref<8x4xf32, #tpu.memory_space<vmem>>, %arg5: memref<8x1xf32, #tpu.memory_space<vmem>>, %arg6: memref<1xf32, #tpu.memory_space<smem>>, %arg7: memref<1xf32, #tpu.memory_space<smem>>, %arg8: memref<1x8x256xf32, #tpu.memory_space<vmem>>) attributes {dimension_semantics = [#tpu.dimension_semantics<parallel>], iteration_bounds = array<i64: 2>, scalar_prefetch = 0 : i64, scratch_operands = 0 : i64, tpu.core_type = #tpu.core_type<tc>, window_params = [{transform_indices = @transform_0, window_bounds = array<i64: 1, 8, 256>}, {pipeline_mode = #tpu.pipeline_mode<synchronous>, transform_indices = @transform_1, window_bounds = array<i64: 8, 4>}, {pipeline_mode = #tpu.pipeline_mode<synchronous>, transform_indices = @transform_2, window_bounds = array<i64: 1, 4>}, {pipeline_mode = #tpu.pipeline_mode<synchronous>, transform_indices = @transform_3, window_bounds = array<i64: 8, 4>}, {pipeline_mode = #tpu.pipeline_mode<synchronous>, transform_indices = @transform_4, window_bounds = array<i64: 8, 1>}, {transform_indices = @transform_5, window_bounds = array<i64: 1>}, {transform_indices = @transform_6, window_bounds = array<i64: 1>}, {transform_indices = @transform_7, window_bounds = array<i64: 1, 8, 256>}]} {
    %c0 = arith.constant 0 : index
    %c0_0 = arith.constant 0 : index
    %c0_1 = arith.constant 0 : index
    %0 = vector.load %arg1[%c0, %c0_0, %c0_1] : memref<1x8x256xf32, #tpu.memory_space<vmem>>, vector<1x8x256xf32>
    %1 = vector.shape_cast %0 : vector<1x8x256xf32> to vector<8x256xf32>
    %cst = arith.constant dense<0.000000e+00> : vector<8xf32>
    %2 = vector.multi_reduction <add>, %1, %cst [1] : vector<8x256xf32> to vector<8xf32>
    %3 = vector.shape_cast %2 : vector<8xf32> to vector<8x1xf32>
    %cst_2 = arith.constant 3.906250e-03 : f32
    %4 = vector.broadcast %cst_2 : f32 to vector<8x1xf32>
    %5 = arith.mulf %3, %4 : vector<8x1xf32>
    %c0_3 = arith.constant 0 : index
    %c0_4 = arith.constant 0 : index
    %6 = vector.load %arg2[%c0_3, %c0_4] : memref<8x4xf32, #tpu.memory_space<vmem>>, vector<8x4xf32>
    %c0_5 = arith.constant 0 : index
    %c0_6 = arith.constant 0 : index
    %7 = vector.load %arg3[%c0_5, %c0_6] : memref<1x4xf32, #tpu.memory_space<vmem>>, vector<1x4xf32>
    %c0_7 = arith.constant 0 : index
    %c0_8 = arith.constant 0 : index
    %8 = vector.load %arg4[%c0_7, %c0_8] : memref<8x4xf32, #tpu.memory_space<vmem>>, vector<8x4xf32>
    %c0_9 = arith.constant 0 : index
    %c0_10 = arith.constant 0 : index
    %9 = vector.load %arg5[%c0_9, %c0_10] : memref<8x1xf32, #tpu.memory_space<vmem>>, vector<8x1xf32>
    %c0_11 = arith.constant 0 : index
    %10 = memref.load %arg6[%c0_11] : memref<1xf32, #tpu.memory_space<smem>>
    %c0_12 = arith.constant 0 : index
    %11 = memref.load %arg7[%c0_12] : memref<1xf32, #tpu.memory_space<smem>>
    %12 = vector.broadcast %5 : vector<8x1xf32> to vector<8x4xf32>
    %13 = arith.mulf %6, %12 : vector<8x4xf32>
    %cst_13 = arith.constant dense<0.000000e+00> : vector<4xf32>
    %14 = vector.multi_reduction <add>, %13, %cst_13 [0] : vector<8x4xf32> to vector<4xf32>
    %15 = vector.shape_cast %14 : vector<4xf32> to vector<1x4xf32>
    %16 = arith.addf %15, %7 : vector<1x4xf32>
    %17 = arith.negf %16 : vector<1x4xf32>
    %18 = math.exp %17 : vector<1x4xf32>
    %cst_14 = arith.constant 1.000000e+00 : f32
    %19 = vector.broadcast %cst_14 : f32 to vector<1x4xf32>
    %20 = arith.addf %19, %18 : vector<1x4xf32>
    %21 = arith.divf %19, %20 : vector<1x4xf32>
    %22 = vector.broadcast %11 : f32 to vector<1x4xf32>
    %23 = arith.mulf %22, %16 : vector<1x4xf32>
    %24 = math.sin %23 : vector<1x4xf32>
    %25 = vector.broadcast %10 : f32 to vector<1x4xf32>
    %26 = arith.mulf %25, %24 : vector<1x4xf32>
    %27 = arith.addf %16, %26 : vector<1x4xf32>
    %28 = arith.mulf %21, %27 : vector<1x4xf32>
    %29 = vector.broadcast %28 : vector<1x4xf32> to vector<8x4xf32>
    %30 = arith.mulf %8, %29 : vector<8x4xf32>
    %cst_15 = arith.constant dense<0.000000e+00> : vector<8xf32>
    %31 = vector.multi_reduction <add>, %30, %cst_15 [1] : vector<8x4xf32> to vector<8xf32>
    %32 = vector.shape_cast %31 : vector<8xf32> to vector<8x1xf32>
    %33 = arith.addf %32, %9 : vector<8x1xf32>
    %34 = arith.negf %33 : vector<8x1xf32>
    %35 = math.exp %34 : vector<8x1xf32>
    %cst_16 = arith.constant 1.000000e+00 : f32
    %36 = vector.broadcast %cst_16 : f32 to vector<8x1xf32>
    %37 = arith.addf %36, %35 : vector<8x1xf32>
    %38 = arith.divf %36, %37 : vector<8x1xf32>
    %39 = vector.broadcast %38 : vector<8x1xf32> to vector<8x256xf32>
    %40 = arith.mulf %1, %39 : vector<8x256xf32>
    %c0_17 = arith.constant 0 : index
    %c0_18 = arith.constant 0 : index
    %c0_19 = arith.constant 0 : index
    %41 = vector.load %arg8[%c0_17, %c0_18, %c0_19] : memref<1x8x256xf32, #tpu.memory_space<vmem>>, vector<1x8x256xf32>
    %42 = vector.shape_cast %41 : vector<1x8x256xf32> to vector<8x256xf32>
    %43 = vector.shape_cast %40 : vector<8x256xf32> to vector<1x8x256xf32>
    tpu.vector_store %arg8[%c0_17, %c0_18, %c0_19], %43 {strides = array<i32>} : memref<1x8x256xf32, #tpu.memory_space<vmem>>, vector<1x8x256xf32>,
    return
  }
  func.func @transform_0(%arg0: i32) -> (i32, i32, i32) {
    %c0_i32 = arith.constant 0 : i32
    %c0_i32_0 = arith.constant 0 : i32
    %c0_i32_1 = arith.constant 0 : i32
    return %arg0, %c0_i32, %c0_i32_0 : i32, i32, i32
  }
  func.func @transform_1(%arg0: i32) -> (i32, i32) {
    %c0_i32 = arith.constant 0 : i32
    %c0_i32_0 = arith.constant 0 : i32
    %c0_i32_1 = arith.constant 0 : i32
    return %c0_i32, %c0_i32_0 : i32, i32
  }
  func.func @transform_2(%arg0: i32) -> (i32, i32) {
    %c0_i32 = arith.constant 0 : i32
    %c0_i32_0 = arith.constant 0 : i32
    %c0_i32_1 = arith.constant 0 : i32
    return %c0_i32, %c0_i32_0 : i32, i32
  }
  func.func @transform_3(%arg0: i32) -> (i32, i32) {
    %c0_i32 = arith.constant 0 : i32
    %c0_i32_0 = arith.constant 0 : i32
    %c0_i32_1 = arith.constant 0 : i32
    return %c0_i32, %c0_i32_0 : i32, i32
  }
  func.func @transform_4(%arg0: i32) -> (i32, i32) {
    %c0_i32 = arith.constant 0 : i32
    %c0_i32_0 = arith.constant 0 : i32
    %c0_i32_1 = arith.constant 0 : i32
    return %c0_i32, %c0_i32_0 : i32, i32
  }
  func.func @transform_5(%arg0: i32) -> i32 {
    %c0_i32 = arith.constant 0 : i32
    %c0_i32_0 = arith.constant 0 : i32
    return %c0_i32 : i32
  }
  func.func @transform_6(%arg0: i32) -> i32 {
    %c0_i32 = arith.constant 0 : i32
    %c0_i32_0 = arith.constant 0 : i32
    return %c0_i32 : i32
  }
  func.func @transform_7(%arg0: i32) -> (i32, i32, i32) {
    %c0_i32 = arith.constant 0 : i32
    %c0_i32_0 = arith.constant 0 : i32
    %c0_i32_1 = arith.constant 0 : i32
    return %arg0, %c0_i32, %c0_i32_0 : i32, i32, i32
  }
}

</mosaic_0001>

<llo_original>
// kernel: tpu_custom_call.1
$region0: #{tpu_custom_call.1}
  #allocation0 [shape = 'u32[]', space=smem, size = 0x4, offset = 0x4, fixed_abs, tag = 'smem constant byte address 0x4 - core index']
  #allocation1 [shape = 'u32[144,128]{1,0:T(1,128)}', space=vmem, size = 0x12000, scoped, tag = 'internal scratch']
  #allocation2 [shape = 'f32[1]{0:T(128)S(6)}', space=smem, size = 0x200, scoped, tag = 'scoped memory for tpu_custom_call.1']
  #allocation3 [shape = 'f32[1]{0:T(128)S(6)}', space=smem, size = 0x200, scoped, tag = 'scoped memory for tpu_custom_call.1']
  %s0 = inlined_call_operand.vmem [shape: f32[2,8,256], index: 0, kind: input, shape index: {}]
  %s1 = inlined_call_operand.vmem [shape: f32[8,4], index: 1, kind: input, shape index: {}]
  %s2 = inlined_call_operand.vmem [shape: f32[1,4], index: 2, kind: input, shape index: {}]
  %s3 = inlined_call_operand.vmem [shape: f32[8,4], index: 3, kind: input, shape index: {}]
  %s4 = inlined_call_operand.vmem [shape: f32[8,1], index: 4, kind: input, shape index: {}]
  %s5 = inlined_call_operand.<no memory space> [shape: f32[1], index: 5, kind: input, shape index: {}]
  %s6 = inlined_call_operand.<no memory space> [shape: f32[1], index: 6, kind: input, shape index: {}]
  %s7 = inlined_call_operand.hbm [shape: f32[2,8,256], index: 7, kind: output, shape index: {}]
  %s8 = sld [smem:[#allocation0]]
  $region61: #{tpu_custom_call.1} parent=0
    _
  %s10 = ssub.s32 1, %s8
  %s11 = scalar_select 0, %s10, %s8
  %12 = sst [smem:[#allocation2]] %s5
  %13 = sst [smem:[#allocation3]] %s6
  $region1: #{tpu_custom_call.1} parent=0
    #allocation4 [shape = 'u8[16384]{0}', space=vmem, size = 0x4000, scoped, tag = 'output window, operand 0']
    #allocation5 [shape = 's32[2]{0}', space=sflag, size = 0x8, scoped, tag = 'scoped memory for tpu_custom_call.1']
    %14 = vsyncpa [#allocation5], 0
    %s15 = scalar_lea.sflag [#allocation5], 1
    %16 = vsyncpa %s15, 0
    loop: start=0, step=1, limit=4
    $region2: #{tpu_custom_call.1} parent=1 // loop_pre_header
      _
    $region3: #{tpu_custom_call.1} parent=1 // loop_header
      %s18 = sphi 0, %s22
      %p19 = scmp.ge.s32.totalorder %s18, 4
      %s28 = sphi 0, %s30
      %s31 = sphi 0, %s28
      %s32 = sphi 0, %s31
      %s48 = sphi 0, %s32
      %s52 = sphi 0, %s52
      %s54 = sphi 0, %s52
      %s55 = sphi 0, %s54
      %s69 = sphi 0, %s55
      %s73 = sphi 0, %s73
      %s75 = sphi 0, %s73
      %s76 = sphi 0, %s75
      %s90 = sphi 0, %s76
      %s94 = sphi 0, %s94
      %s96 = sphi 0, %s94
      %s97 = sphi 0, %s96
      %s111 = sphi 0, %s97
      %s115 = sphi 0, %s115
      %s117 = sphi 0, %s115
      %s118 = sphi 0, %s117
      %s132 = sphi 0, %s118
      %s136 = sphi 0, %s136
      %s138 = sphi 0, %s136
      %s139 = sphi 0, %s138
      %s153 = sphi 0, %s139
      %s157 = sphi 0, %s157
      %s159 = sphi 0, %s157
      %s160 = sphi 0, %s159
      %s174 = sphi 0, %s160
      %s180 = sphi 0, %s182
      %s183 = sphi 0, %s180
      %s184 = sphi 0, %s183
      %s200 = sphi 0, %s184
    $region4: #{tpu_custom_call.1} parent=1 // loop_header_branch
      %21 = sbr.rel (%p19) target = $region8
    $region5: #{tpu_custom_call.1} parent=1 // loop_body
      %s23 = ssub.s32 %s18, 1
      %s24 = ssub.s32 %s18, 2
      %s25 = sadd.s32 %s18, 1
      %s26 = ssub.s32 %s18, %s25
      %p27 = scmp.eq.s32.totalorder %s26, 0
      %s29 = sadd.s32 %s28, 1
      %s30 = scalar_select %p27, %s28, %s29
      %p33 = pneg %p27
      %p34 = scmp.eq.s32.totalorder %s18, 1
      %p35 = por %p33, %p34
      %p36 = scmp.ne.s32.totalorder %s28, %s31
      %p37 = scmp.eq.s32.totalorder %s18, 0
      %p38 = por %p36, %p37
      %p39 = scmp.ne.s32.totalorder %s28, %s31
      %p40 = scmp.eq.s32.totalorder %s23, 1
      %p41 = por %p39, %p40
      %p42 = scmp.ne.s32.totalorder %s31, %s32
      %p43 = scmp.eq.s32.totalorder %s23, 0
      %p44 = por %p42, %p43
      %p45 = scmp.ne.s32.totalorder %s31, %s32
      %p46 = scmp.eq.s32.totalorder %s24, 1
      %p47 = por %p45, %p46
      %p49 = scmp.ne.s32.totalorder %s32, %s48
      %p50 = scmp.eq.s32.totalorder %s24, 0
      %p51 = por %p49, %p50
      %s53 = sadd.s32 %s52, 1
      %p56 = scmp.eq.s32.totalorder %s18, 1
      %p57 = scmp.ne.s32.totalorder %s52, %s54
      %p58 = scmp.eq.s32.totalorder %s18, 0
      %p59 = por %p57, %p58
      %p60 = scmp.ne.s32.totalorder %s52, %s54
      %p61 = scmp.eq.s32.totalorder %s23, 1
      %p62 = por %p60, %p61
      %p63 = scmp.ne.s32.totalorder %s54, %s55
      %p64 = scmp.eq.s32.totalorder %s23, 0
      %p65 = por %p63, %p64
      %p66 = scmp.ne.s32.totalorder %s54, %s55
      %p67 = scmp.eq.s32.totalorder %s24, 1
      %p68 = por %p66, %p67
      %p70 = scmp.ne.s32.totalorder %s55, %s69
      %p71 = scmp.eq.s32.totalorder %s24, 0
      %p72 = por %p70, %p71
      %s74 = sadd.s32 %s73, 1
      %p77 = scmp.eq.s32.totalorder %s18, 1
      %p78 = scmp.ne.s32.totalorder %s73, %s75
      %p79 = scmp.eq.s32.totalorder %s18, 0
      %p80 = por %p78, %p79
      %p81 = scmp.ne.s32.totalorder %s73, %s75
      %p82 = scmp.eq.s32.totalorder %s23, 1
      %p83 = por %p81, %p82
      %p84 = scmp.ne.s32.totalorder %s75, %s76
      %p85 = scmp.eq.s32.totalorder %s23, 0
      %p86 = por %p84, %p85
      %p87 = scmp.ne.s32.totalorder %s75, %s76
      %p88 = scmp.eq.s32.totalorder %s24, 1
      %p89 = por %p87, %p88
      %p91 = scmp.ne.s32.totalorder %s76, %s90
      %p92 = scmp.eq.s32.totalorder %s24, 0
      %p93 = por %p91, %p92
      %s95 = sadd.s32 %s94, 1
      %p98 = scmp.eq.s32.totalorder %s18, 1
      %p99 = scmp.ne.s32.totalorder %s94, %s96
      %p100 = scmp.eq.s32.totalorder %s18, 0
      %p101 = por %p99, %p100
      %p102 = scmp.ne.s32.totalorder %s94, %s96
      %p103 = scmp.eq.s32.totalorder %s23, 1
      %p104 = por %p102, %p103
      %p105 = scmp.ne.s32.totalorder %s96, %s97
      %p106 = scmp.eq.s32.totalorder %s23, 0
      %p107 = por %p105, %p106
      %p108 = scmp.ne.s32.totalorder %s96, %s97
      %p109 = scmp.eq.s32.totalorder %s24, 1
      %p110 = por %p108, %p109
      %p112 = scmp.ne.s32.totalorder %s97, %s111
      %p113 = scmp.eq.s32.totalorder %s24, 0
      %p114 = por %p112, %p113
      %s116 = sadd.s32 %s115, 1
      %p119 = scmp.eq.s32.totalorder %s18, 1
      %p120 = scmp.ne.s32.totalorder %s115, %s117
      %p121 = scmp.eq.s32.totalorder %s18, 0
      %p122 = por %p120, %p121
      %p123 = scmp.ne.s32.totalorder %s115, %s117
      %p124 = scmp.eq.s32.totalorder %s23, 1
      %p125 = por %p123, %p124
      %p126 = scmp.ne.s32.totalorder %s117, %s118
      %p127 = scmp.eq.s32.totalorder %s23, 0
      %p128 = por %p126, %p127
      %p129 = scmp.ne.s32.totalorder %s117, %s118
      %p130 = scmp.eq.s32.totalorder %s24, 1
      %p131 = por %p129, %p130
      %p133 = scmp.ne.s32.totalorder %s118, %s132
      %p134 = scmp.eq.s32.totalorder %s24, 0
      %p135 = por %p133, %p134
      %s137 = sadd.s32 %s136, 1
      %p140 = scmp.eq.s32.totalorder %s18, 1
      %p141 = scmp.ne.s32.totalorder %s136, %s138
      %p142 = scmp.eq.s32.totalorder %s18, 0
      %p143 = por %p141, %p142
      %p144 = scmp.ne.s32.totalorder %s136, %s138
      %p145 = scmp.eq.s32.totalorder %s23, 1
      %p146 = por %p144, %p145
      %p147 = scmp.ne.s32.totalorder %s138, %s139
      %p148 = scmp.eq.s32.totalorder %s23, 0
      %p149 = por %p147, %p148
      %p150 = scmp.ne.s32.totalorder %s138, %s139
      %p151 = scmp.eq.s32.totalorder %s24, 1
      %p152 = por %p150, %p151
      %p154 = scmp.ne.s32.totalorder %s139, %s153
      %p155 = scmp.eq.s32.totalorder %s24, 0
      %p156 = por %p154, %p155
      %s158 = sadd.s32 %s157, 1
      %p161 = scmp.eq.s32.totalorder %s18, 1
      %p162 = scmp.ne.s32.totalorder %s157, %s159
      %p163 = scmp.eq.s32.totalorder %s18, 0
      %p164 = por %p162, %p163
      %p165 = scmp.ne.s32.totalorder %s157, %s159
      %p166 = scmp.eq.s32.totalorder %s23, 1
      %p167 = por %p165, %p166
      %p168 = scmp.ne.s32.totalorder %s159, %s160
      %p169 = scmp.eq.s32.totalorder %s23, 0
      %p170 = por %p168, %p169
      %p171 = scmp.ne.s32.totalorder %s159, %s160
      %p172 = scmp.eq.s32.totalorder %s24, 1
      %p173 = por %p171, %p172
      %p175 = scmp.ne.s32.totalorder %s160, %s174
      %p176 = scmp.eq.s32.totalorder %s24, 0
      %p177 = por %p175, %p176
      %s178 = ssub.s32 %s18, %s25
      %p179 = scmp.eq.s32.totalorder %s178, 0
      %s181 = sadd.s32 %s180, 1
      %s182 = scalar_select %p179, %s180, %s181
      %p185 = pneg %p179
      %p186 = scmp.eq.s32.totalorder %s18, 1
      %p187 = por %p185, %p186
      %p188 = scmp.ne.s32.totalorder %s180, %s183
      %p189 = scmp.eq.s32.totalorder %s18, 0
      %p190 = por %p188, %p189
      %p191 = scmp.ne.s32.totalorder %s180, %s183
      %p192 = scmp.eq.s32.totalorder %s23, 1
      %p193 = por %p191, %p192
      %p194 = scmp.ne.s32.totalorder %s183, %s184
      %p195 = scmp.eq.s32.totalorder %s23, 0
      %p196 = por %p194, %p195
      %p197 = scmp.ne.s32.totalorder %s183, %s184
      %p198 = scmp.eq.s32.totalorder %s24, 1
      %p199 = por %p197, %p198
      %p201 = scmp.ne.s32.totalorder %s184, %s200
      %p202 = scmp.eq.s32.totalorder %s24, 0
      %p203 = por %p201, %p202
      %p204 = scmp.le.s32.totalorder 1, %s18
      %p205 = scmp.lt.s32.totalorder %s18, 3
      %p206 = pnand %p204, %p205
      %p207 = pneg %p206
      // Predicated region
      $region9: #{tpu_custom_call.1} parent=5 // pred_check
        _
      $region10: #{tpu_custom_call.1} parent=5 // pred_check_branch
        %209 = sbr.rel (%p206) target = $region12
      $region11: #{tpu_custom_call.1} parent=5 // pred_region
        %s210 = ssub.s32 %s18, 1
        // Predicated region
        $region13: #{tpu_custom_call.1} parent=11 // pred_check
          %p211 = pneg %p65
        $region14: #{tpu_custom_call.1} parent=11 // pred_check_branch
          %213 = sbr.rel (%p211) target = $region16
        $region15: #{tpu_custom_call.1} parent=11 // pred_region
          _
        $region16: #{tpu_custom_call.1} parent=11 // pred_fallthru
          _
        // Predicated region
        $region17: #{tpu_custom_call.1} parent=11 // pred_check
          %p214 = pneg %p86
        $region18: #{tpu_custom_call.1} parent=11 // pred_check_branch
          %216 = sbr.rel (%p214) target = $region20
        $region19: #{tpu_custom_call.1} parent=11 // pred_region
          _
        $region20: #{tpu_custom_call.1} parent=11 // pred_fallthru
          _
        // Predicated region
        $region21: #{tpu_custom_call.1} parent=11 // pred_check
          %p217 = pneg %p107
        $region22: #{tpu_custom_call.1} parent=11 // pred_check_branch
          %219 = sbr.rel (%p217) target = $region24
        $region23: #{tpu_custom_call.1} parent=11 // pred_region
          _
        $region24: #{tpu_custom_call.1} parent=11 // pred_fallthru
          _
        // Predicated region
        $region25: #{tpu_custom_call.1} parent=11 // pred_check
          %p220 = pneg %p128
        $region26: #{tpu_custom_call.1} parent=11 // pred_check_branch
          %222 = sbr.rel (%p220) target = $region28
        $region27: #{tpu_custom_call.1} parent=11 // pred_region
          _
        $region28: #{tpu_custom_call.1} parent=11 // pred_fallthru
          _
        // Predicated region
        $region29: #{tpu_custom_call.1} parent=11 // pred_check
          %p223 = pneg %p149
        $region30: #{tpu_custom_call.1} parent=11 // pred_check_branch
          %225 = sbr.rel (%p223) target = $region32
        $region31: #{tpu_custom_call.1} parent=11 // pred_region
          _
        $region32: #{tpu_custom_call.1} parent=11 // pred_fallthru
          _
        // Predicated region
        $region33: #{tpu_custom_call.1} parent=11 // pred_check
          %p226 = pneg %p170
        $region34: #{tpu_custom_call.1} parent=11 // pred_check_branch
          %228 = sbr.rel (%p226) target = $region36
        $region35: #{tpu_custom_call.1} parent=11 // pred_region
          _
        $region36: #{tpu_custom_call.1} parent=11 // pred_fallthru
          _
      $region12: #{tpu_custom_call.1} parent=5 // pred_fallthru
        _
      %p229 = scmp.lt.s32.totalorder %s18, 2
      // Predicated region
      $region37: #{tpu_custom_call.1} parent=5 // pred_check
        %p230 = pneg %p229
      $region38: #{tpu_custom_call.1} parent=5 // pred_check_branch
        %232 = sbr.rel (%p230) target = $region40
      $region39: #{tpu_custom_call.1} parent=5 // pred_region
        // Predicated region
        $region41: #{tpu_custom_call.1} parent=39 // pred_check
          %p233 = pneg %p38
        $region42: #{tpu_custom_call.1} parent=39 // pred_check_branch
          %235 = sbr.rel (%p233) target = $region44
        $region43: #{tpu_custom_call.1} parent=39 // pred_region
          %p236 = scmp.lt.s32.totalorder %s18, 1
          %s237 = scalar_select %p236, %s18, 1
          %s238 = smul.addr %s237, 2
          %s239 = smul.addr %s238, 8
          %s240 = scalar_lea.vmem %s0, %s239
        $region44: #{tpu_custom_call.1} parent=39 // pred_fallthru
          _
      $region40: #{tpu_custom_call.1} parent=5 // pred_fallthru
        _
      %p241 = scmp.le.s32.totalorder 1, %s18
      %p242 = scmp.lt.s32.totalorder %s18, 3
      %p243 = pnand %p241, %p242
      %p244 = pneg %p243
      // Predicated region
      $region45: #{tpu_custom_call.1} parent=5 // pred_check
        _
      $region46: #{tpu_custom_call.1} parent=5 // pred_check_branch
        %246 = sbr.rel (%p243) target = $region48
      $region47: #{tpu_custom_call.1} parent=5 // pred_region
        %s247 = ssub.s32 %s18, 1
        %p248 = scmp.lt.s32.totalorder %s23, 1
        %s249 = scalar_select %p248, %s23, 1
        %s250 = smul.addr %s249, 2
        %s251 = smul.addr %s250, 8
        %s252 = scalar_lea.vmem %s0, %s251
        %p253 = pneg %p44
        %p254 = pneg %p41
        %p255 = pneg %p65
        %p256 = pneg %p62
        %p257 = pneg %p86
        %p258 = pneg %p83
        %p259 = pneg %p107
        %p260 = pneg %p104
        %p261 = pneg %p128
        %p262 = pneg %p125
        %p263 = pneg %p149
        %p264 = pneg %p146
        %p265 = pneg %p170
        %p266 = pneg %p167
        %p267 = pneg %p196
        %p268 = pneg %p193
        %s269 = sand.u32 %s183, 1
        %s270 = scalar_lea.sflag [#allocation5], %s269
        %s271 = sand.u32 %s183, 1
        %s272 = smul.addr %s271, 16
        %s273 = scalar_lea.vmem [#allocation4], %s272
        %p274 = scmp.lt.s32.totalorder %s23, 1
        %s275 = scalar_select %p274, %s23, 1
        %s276 = smul.addr %s275, 2
        %s277 = smul.addr %s276, 8
        %s278 = scalar_lea.vmem %s0, %s277
        %v279 = vld [vmem:[%s278] sm:$0xff]
        %v280 = vld [vmem:[%s278 + $0x8] sm:$0xff]
        %v281 = vadd.f32 %v279, %v280
        %282 = vadd.xlane.f32.xlu0 %v281
        %v283 = vpop.xlane.xlu0 %282
        %v284 = vmul.f32 %v283, 0.00390625
        %v285 = vld [vmem:[%s1] sm:$0xff]
        %v286 = vld [vmem:[%s2] sm:$0x1]
        %v287 = vld [vmem:[%s3] sm:$0xff]
        %v288 = vld [vmem:[%s4] sm:$0xff]
        %s289 = sld [smem:[#allocation2]]
        %s290 = sld [smem:[#allocation3]]
        %v291 = vmul.f32 %v285, %v284
        %vm292 = vcmask 31744
        %v293 = vsel %vm292, %v291, 0.0
        %v294 = vrot.slane %v293, 4
        %v295 = vadd.f32 %v293, %v294
        %v296 = vrot.slane %v295, 2
        %v297 = vadd.f32 %v295, %v296
        %v298 = vrot.slane %v297, 1
        %v299 = vadd.f32 %v297, %v298
        %v300 = vadd.f32 %v299, %v286
        %v301 = vxor.u32 %v300, 2147483648
        %v302 = vmul.f32 %v301, 1.442695
        %v303 = vpow.pop %v302
        %v304 = vadd.f32 %v303, 1.0
        %v305 = vrcp.pop %v304
        %v306 = vmul.f32 1.0, %v305
        %v307 = vstv %s290
        %v308 = vmul.f32 %v307, %v300
        %v309 = vand.u32 2147483647, %v308
        %vm310 = vcmp.le.f32.partialorder %v309, 0.7853982
        %vm311 = vcmp.lt.s32.totalorder %v308, 0
        %v312 = vand.u32 %v308, 2139095040
        %v313 = vshrl.u32 %v312, 23
        %v314 = vsub.s32 %v313, 127
        %v315 = vand.u32 2147483647, %v308
        %v316 = vand.u32 %v315, 8388607
        %v317 = vor.u32 %v316, 8388608
        %v318 = vsub.s32 0, %v317
        %v319 = vadd.s32 %v314, 1
        %vm320 = vcmp.gt.s32.totalorder %v319, 0
        %v321 = vsel %vm320, %v319, 0
        %v322 = vshrl.u32 %v321, 5
        %v323 = vand.u32 %v321, 31
        %v324 = vsub.s32 32, %v323
        %v325 = vshrl.u32 683565275, %v324
        %v326 = vshll.u32 683565275, %v323
        %v327 = vshrl.u32 2475754826, %v324
        %v328 = vor.u32 %v326, %v327
        %v329 = vshll.u32 2475754826, %v323
        %v330 = vshrl.u32 2131351028, %v324
        %v331 = vor.u32 %v329, %v330
        %v332 = vshll.u32 2131351028, %v323
        %v333 = vshrl.u32 2102212464, %v324
        %v334 = vor.u32 %v332, %v333
        %v335 = vshll.u32 2102212464, %v323
        %v336 = vshrl.u32 920167782, %v324
        %v337 = vor.u32 %v335, %v336
        %v338 = vshll.u32 920167782, %v323
        %v339 = vshrl.u32 1326507024, %v324
        %v340 = vor.u32 %v338, %v339
        %vm341 = vcmp.lt.s32.totalorder %v322, 1
        %vm342 = vcmp.lt.s32.totalorder %v322, 2
        %vm343 = vcmp.lt.s32.totalorder %v322, 3
        %vm344 = vcmp.lt.s32.totalorder %v322, 4
        %v345 = vsel %vm341, %v325, %v328
        %v346 = vsel %vm344, %v334, 2102212464
        %v347 = vsel %vm343, %v331, %v346
        %v348 = vsel %vm342, %v345, %v347
        %v349 = vsel %vm341, %v328, %v331
        %v350 = vsel %vm344, %v337, 920167782
        %v351 = vsel %vm343, %v334, %v350
        %v352 = vsel %vm342, %v349, %v351
        %v353 = vsel %vm341, %v331, %v334
        %v354 = vsel %vm344, %v340, 1326507024
        %v355 = vsel %vm343, %v337, %v354
        %v356 = vsel %vm342, %v353, %v355
        %v357 = vshll.u32 %v317, 8
        %v358 = vmul.u32.u64.compose %v357, %v356
        %v359 = vextract.low.u32 %v358
        %v360 = vextract.high.u32 %v358
        %v361 = vmul.u32.u64.compose %v357, %v352
        %v362 = vextract.low.u32 %v361
        %v363 = vextract.high.u32 %v361
        %v364 = vmul.u32 %v357, %v348
        %v365 = vadd.s32 %v360, %v362
        %vm366 = vc.u32 %v360, %v362
        %v367 = vadd.s32 %v363, 1
        %v368 = vsel %vm366, %v367, %v363
        %v369 = vadd.s32 %v364, %v368
        %v370 = vadd.s32 %v369, 536870912
        %v371 = vshrl.u32 %v370, 30
        %v372 = vshll.u32 %v371, 30
        %v373 = vsub.s32 %v369, %v372
        %vm374 = vcmp.lt.s32.totalorder %v373, 0
        %v375 = vsub.s32 0, %v373
        %v376 = vsel %vm374, %v375, %v373
        %v377 = vclz %v376
        %v378 = vsub.s32 %v377, 2
        %vm379 = vcmp.gt.s32.totalorder 0, %v378
        %v380 = vsel %vm379, 0, %v378
        %v381 = vsub.s32 32, %v380
        %v382 = vshll.u32 %v373, %v380
        %v383 = vshrl.u32 %v365, %v381
        %v384 = vor.u32 %v382, %v383
        %v385 = vsub.s32 4294967266, %v380
        %v386 = vadd.s32 %v385, 127
        %v387 = vshll.u32 %v386, 23
        %v388 = vor.u32 4788187, %v387
        %v389 = vand.u32 2147483647, %v388
        %v391 = vcvt.s32.f32 %v384
        %v392 = vmul.f32 %v391, %v389
        %v393 = vxor.u32 %v392, 2147483648
        %v394 = vsel %vm311, %v393, %v392
        %v395 = vsub.s32 4, %v371
        %v396 = vsel %vm311, %v395, %v371
        %v397 = vsel %vm310, %v308, %v394
        %v398 = vsel %vm310, 0, %v396
        %v399 = vcosq.f32.pop %v397
        %v400 = vsinq.f32.pop %v397
        %vm401 = vweird.f32 %v308
        %v402 = vadd.s32 %v398, 3
        %v403 = vand.u32 %v402, 3
        %vm404 = vcmp.lt.s32.totalorder %v403, 2
        %vm405 = vcmp.eq.s32.totalorder %v403, 0
        %v406 = vxor.u32 %v400, 2147483648
        %v407 = vsel %vm405, %v399, %v406
        %vm408 = vcmp.eq.s32.totalorder %v403, 2
        %v409 = vxor.u32 %v399, 2147483648
        %v410 = vsel %vm408, %v409, %v400
        %v411 = vsel %vm404, %v407, %v410
        %v412 = vsel %vm401, nan, %v411
        %v413 = vstv %s289
        %v414 = vmul.f32 %v413, %v412
        %v415 = vadd.f32 %v300, %v414
        %v416 = vmul.f32 %v306, %v415
        %v417 = vlaneseq
        %v418 = vshrl.u32 %v417, 7
        %v419 = vsub.s32 0, %v418
        %v420 = vrot.slane %v416, %v419
        %v421 = vmul.f32 %v287, %v420
        %v422 = vsel %vm292, %v421, 0.0
        %423 = vadd.xlane.f32.xlu0 %v422
        %v424 = vpop.xlane.xlu0 %423
        %v425 = vadd.f32 %v424, %v288
        %v426 = vxor.u32 %v425, 2147483648
        %v427 = vmul.f32 %v426, 1.442695
        %v428 = vpow.pop %v427
        %v429 = vadd.f32 %v428, 1.0
        %v430 = vrcp.pop %v429
        %v431 = vmul.f32 1.0, %v430
        %433 = vset.pattern.permute.xlu0 0
        %434 = vperm.xlu0 %433, %v431
        %v435 = vpop.permute.xlu0 %434
        %v437 = vmul.f32 %v279, %v435
        %v438 = vmul.f32 %v280, %v435
        %439 = vst [vmem:[%s273] sm:$0xff] %v437
        %440 = vst [vmem:[%s273 + $0x8] sm:$0xff] %v438
        %s441 = sand.u32 %s183, 1
        %s442 = scalar_lea.sflag [#allocation5], %s441
        %s443 = sand.u32 %s183, 1
        %s444 = smul.addr %s443, 16
        %s445 = scalar_lea.vmem [#allocation4], %s444
        // Predicated region
        $region49: #{tpu_custom_call.1} parent=47 // pred_check
          %p446 = pneg %p193
        $region50: #{tpu_custom_call.1} parent=47 // pred_check_branch
          %448 = sbr.rel (%p446) target = $region52
        $region51: #{tpu_custom_call.1} parent=47 // pred_region
          %s450 = ssub.s32 256, 256
          %451 = vsyncadd %s442, %s450
          %s452 = smul.addr %s23, 2
          %s453 = smul.addr %s452, 128
          %s454 = scalar_lea.hbm %s7, %s453
          %s456 = sshll.u32 %s445, 4
          %s457 = int_to_ptr.vmem [resolvable:$true] %s456
          %459 = dma.vmem_to_hbm [thread:$0]  %s457, 256, %s454, %s442
        $region52: #{tpu_custom_call.1} parent=47 // pred_fallthru
          _
      $region48: #{tpu_custom_call.1} parent=5 // pred_fallthru
        _
      %p460 = scmp.le.s32.totalorder 2, %s18
      // Predicated region
      $region53: #{tpu_custom_call.1} parent=5 // pred_check
        %p461 = pneg %p460
      $region54: #{tpu_custom_call.1} parent=5 // pred_check_branch
        %463 = sbr.rel (%p461) target = $region56
      $region55: #{tpu_custom_call.1} parent=5 // pred_region
        %s464 = ssub.s32 %s18, 2
        // Predicated region
        $region57: #{tpu_custom_call.1} parent=55 // pred_check
          %p465 = pneg %p199
        $region58: #{tpu_custom_call.1} parent=55 // pred_check_branch
          %467 = sbr.rel (%p465) target = $region60
        $region59: #{tpu_custom_call.1} parent=55 // pred_region
          %s468 = sand.u32 %s184, 1
          %s469 = scalar_lea.sflag [#allocation5], %s468
          %s470 = sand.u32 %s184, 1
          %s471 = smul.addr %s470, 16
          %s472 = scalar_lea.vmem [#allocation4], %s471
          %473 = dma.done %s469, 256
        $region60: #{tpu_custom_call.1} parent=55 // pred_fallthru
          _
      $region56: #{tpu_custom_call.1} parent=5 // pred_fallthru
        _
    $region6: #{tpu_custom_call.1} parent=1 // loop_footer
      %s22 = sadd.s32 1, %s18
    $region7: #{tpu_custom_call.1} parent=1 // loop_footer_branch
      %17 = sbr.rel target = $region3
    $region8: #{tpu_custom_call.1} parent=1 // loop_exit
      _
    %474 = vsyncpa [#allocation5], 1
    %s475 = scalar_lea.sflag [#allocation5], 1
    %476 = vsyncpa %s475, 1

</llo_original>
